<compile_context>
chip_gen: v5e
topology: v5e:2x2
jax: 0.10.0
libtpu: 0.0.40
codegen_flags: <defaults>
</compile_context>

<pallas_src>
import functools

import jax
import jax.numpy as jnp
from jax.experimental import pallas as pl
from jax.experimental.pallas import tpu as pltpu

BN_EPS = 1e-5
FUSED_MAX = 4096                 # batches up to this size take the single fused call
TB_MAX = 8192                    # max rows per batch tile in the two-pass path
VMEM_LIMIT = 32 * 1024 * 1024    # explicit scoped-VMEM cap (>= v5e default, < v7x physical)


def _cdiv(a: int, b: int) -> int:
    return (a + b - 1) // b


def _round_up(n: int, m: int) -> int:
    return ((n + m - 1) // m) * m


# ----------------------------------------------------------------------------- kernels
def _fused_decoder_kernel(x_ref, w1_ref, gamma_ref, beta_ref, w2_ref, b2_ref, o_ref, *, batch):
    """Whole forward for one VMEM-resident batch block (nt == 1 fast path)."""
    # Linear-1 without bias: the bias cancels exactly under training-mode BatchNorm, and
    # zero-padded rows then contribute exactly 0 to the batch statistics below.
    h = jnp.dot(x_ref[...], w1_ref[...], preferred_element_type=jnp.float32)   # (b_pad, 16)
    inv_n = 1.0 / batch
    mean = jnp.sum(h, axis=0, keepdims=True) * inv_n                           # (1, 16)
    var = jnp.maximum(jnp.sum(h * h, axis=0, keepdims=True) * inv_n - mean * mean, 0.0)
    scale = gamma_ref[...] * jax.lax.rsqrt(var + BN_EPS)
    shift = beta_ref[...] - mean * scale
    z = jnp.maximum(h * scale + shift, 0.0)
    # 16 -> 1 projection as a broadcast multiply + lane reduction (MXU would be 1/128 utilized).
    o_ref[...] = jnp.sum(z * w2_ref[...], axis=1, keepdims=True) + b2_ref[...]  # (b_pad, 1)


def _l1_stats_kernel(x_ref, w1t_ref, ht_ref, sum_ref, sq_ref):
    """Per batch tile: ht = W1^T . x^T (lane-dense, batch in lanes) + BN partial sums."""
    # (16, tb) = contract (16, 64) with (tb, 64) on their last dims (standard "A @ B.T" MXU form).
    # Linear-1 bias omitted: exact cancellation under training-mode BatchNorm (see header).
    ht = jax.lax.dot_general(
        w1t_ref[...], x_ref[...],
        dimension_numbers=(((1,), (1,)), ((), ())),
        preferred_element_type=jnp.float32)
    ht_ref[...] = ht
    sum_ref[...] = jnp.sum(ht, axis=1, keepdims=True).reshape(1, 16, 1)
    sq_ref[...] = jnp.sum(ht * ht, axis=1, keepdims=True).reshape(1, 16, 1)


def _bn_relu_l2_kernel(ht_ref, scale_ref, shift_ref, w2_ref, b2_ref, o_ref):
    """Per batch tile: out_row = w2^T . relu(ht * scale + shift) + b2 (all lane-dense)."""
    z = jnp.maximum(ht_ref[...] * scale_ref[...] + shift_ref[...], 0.0)        # (16, tb)
    o_ref[...] = jnp.sum(z * w2_ref[...], axis=0, keepdims=True) + b2_ref[...]  # (1, tb)


# ----------------------------------------------------------------------------- forward paths
def _decoder_fused(x, w1, gamma, beta, w2, b2):
    """Single-call path: the whole (padded) batch is one block."""
    batch = x.shape[0]
    b_pad = _round_up(max(batch, 8), 8)
    if b_pad != batch:
        x = jnp.pad(x, ((0, b_pad - batch), (0, 0)))   # zero rows are stats-neutral (no bias)

    kernel = functools.partial(_fused_decoder_kernel, batch=batch)
    out = pl.pallas_call(
        kernel,
        grid=(1,),
        in_specs=[
            pl.BlockSpec((b_pad, 64), lambda i: (0, 0)),
            pl.BlockSpec((64, 16), lambda i: (0, 0)),
            pl.BlockSpec((1, 16), lambda i: (0, 0)),
            pl.BlockSpec((1, 16), lambda i: (0, 0)),
            pl.BlockSpec((1, 16), lambda i: (0, 0)),
            pl.BlockSpec((1, 1), lambda i: (0, 0)),
        ],
        out_specs=pl.BlockSpec((b_pad, 1), lambda i: (0, 0)),
        out_shape=jax.ShapeDtypeStruct((b_pad, 1), jnp.float32),
        compiler_params=pltpu.CompilerParams(
            dimension_semantics=("arbitrary",),
            vmem_limit_bytes=VMEM_LIMIT),
        cost_estimate=pl.CostEstimate(
            flops=2 * b_pad * 64 * 16 + 10 * b_pad * 16,
            transcendentals=16,
            bytes_accessed=b_pad * (64 * 4 + 4) + 64 * 16 * 4),
    )(x, w1, gamma.reshape(1, 16), beta.reshape(1, 16), w2.reshape(1, 16), b2.reshape(1, 1))
    return out[:batch]


def _decoder_two_pass(x, w1, gamma, beta, w2, b2, *, tb_max):
    """Two gridded passes for batches that do not fit one tile."""
    batch = x.shape[0]
    nt = max(2, _cdiv(batch, tb_max))        # >= 2 tiles so v7x's two TensorCores both get work
    tb = _round_up(_cdiv(batch, nt), 128)    # balanced, lane-aligned tiles (minimal pad waste)
    b_pad = nt * tb
    if b_pad != batch:
        x = jnp.pad(x, ((0, b_pad - batch), (0, 0)))   # zero rows are stats-neutral (no bias)

    parallel = pltpu.CompilerParams(dimension_semantics=("parallel",),
                                    vmem_limit_bytes=VMEM_LIMIT)

    # ---- pass 1: lane-dense ht = W1^T . x^T plus per-tile BN partial sums ------------------
    ht, part_sum, part_sq = pl.pallas_call(
        _l1_stats_kernel,
        grid=(nt,),
        in_specs=[
            pl.BlockSpec((tb, 64), lambda i: (i, 0)),      # x tile (pipelined, double-buffered)
            pl.BlockSpec((16, 64), lambda i: (0, 0)),      # W1^T (resident, DMA'd once)
        ],
        out_specs=[
            pl.BlockSpec((16, tb), lambda i: (0, i)),      # lane-dense hidden activations
            pl.BlockSpec((1, 16, 1), lambda i: (i, 0, 0)),
            pl.BlockSpec((1, 16, 1), lambda i: (i, 0, 0)),
        ],
        out_shape=[
            jax.ShapeDtypeStruct((16, b_pad), jnp.float32),
            jax.ShapeDtypeStruct((nt, 16, 1), jnp.float32),
            jax.ShapeDtypeStruct((nt, 16, 1), jnp.float32),
        ],
        compiler_params=parallel,
        cost_estimate=pl.CostEstimate(
            flops=2 * b_pad * 64 * 16 + 3 * b_pad * 16,
            transcendentals=0,
            bytes_accessed=b_pad * (64 + 16) * 4),
    )(x, jnp.transpose(w1))

    # ---- finalize BN statistics over the full batch (16 features: tiny JAX glue) -----------
    mean = jnp.sum(part_sum, axis=0) / batch                                     # (16, 1)
    var = jnp.maximum(jnp.sum(part_sq, axis=0) / batch - mean * mean, 0.0)       # clamp >= 0
    scale = gamma.reshape(16, 1) * jax.lax.rsqrt(var + BN_EPS)
    shift = beta.reshape(16, 1) - mean * scale

    # ---- pass 2: fused BN + ReLU + Linear(16->1), lane-dense (1, tb) output rows ------------
    out = pl.pallas_call(
        _bn_relu_l2_kernel,
        grid=(nt,),
        in_specs=[
            pl.BlockSpec((16, tb), lambda i: (0, i)),      # ht tile (pipelined)
            pl.BlockSpec((16, 1), lambda i: (0, 0)),       # scale (resident)
            pl.BlockSpec((16, 1), lambda i: (0, 0)),       # shift (resident)
            pl.BlockSpec((16, 1), lambda i: (0, 0)),       # w2 (resident)
            pl.BlockSpec((1, 1), lambda i: (0, 0)),        # b2 (resident)
        ],
        out_specs=pl.BlockSpec((1, tb), lambda i: (0, i)),
        out_shape=jax.ShapeDtypeStruct((1, b_pad), jnp.float32),
        compiler_params=parallel,
        cost_estimate=pl.CostEstimate(
            flops=4 * b_pad * 16,
            transcendentals=0,
            bytes_accessed=b_pad * (16 + 1) * 4),
    )(ht, scale, shift, w2, b2.reshape(1, 1))

    return out[0, :batch].reshape(batch, 1)


def _decoder_forward(x, w1, b1, gamma, beta, w2, b2, *, fused_max=FUSED_MAX, tb_max=TB_MAX):
    """x: (B, 64) f32 -> (B, 1) f32.  Matches the PyTorch Decoder forward in training mode."""
    batch, feat = x.shape
    assert feat == 64
    # b1 is accepted for API parity but never used: training-mode BatchNorm subtracts the batch
    # mean, so the Linear-1 bias cancels exactly from the forward output.
    del b1
    if batch <= fused_max:
        return _decoder_fused(x, w1, gamma, beta, w2, b2)
    return _decoder_two_pass(x, w1, gamma, beta, w2, b2, tb_max=tb_max)


decoder_forward = jax.jit(_decoder_forward)


# ----------------------------------------------------------------------------- helpers
def make_params(key):
    """Deterministic synthetic parameters matching the PyTorch module's shapes."""
    k1, k2, k3, k4, k5, k6 = jax.random.split(key, 6)
    # PyTorch Linear weights are (out, in); stored transposed here as (in, out).
    w1 = jax.random.normal(k1, (64, 16), jnp.float32) * 0.1
    b1 = jax.random.normal(k2, (16,), jnp.float32) * 0.1
    gamma = 1.0 + 0.1 * jax.random.normal(k3, (16,), jnp.float32)
    beta = 0.1 * jax.random.normal(k4, (16,), jnp.float32)
    w2 = jax.random.normal(k5, (16, 1), jnp.float32) * 0.1
    b2 = jax.random.normal(k6, (1,), jnp.float32) * 0.1
    return w1, b1, gamma, beta, w2, b2


def reference_forward(x, w1, b1, gamma, beta, w2, b2):
    h = x @ w1 + b1
    mean = jnp.mean(h, axis=0, keepdims=True)
    var = jnp.mean((h - mean) ** 2, axis=0, keepdims=True)
    h = (h - mean) / jnp.sqrt(var + BN_EPS) * gamma + beta
    h = jnp.maximum(h, 0.0)
    return h @ w2 + b2


# ----------------------------------------------------------------------------- test
if __name__ == "__main__":
    key = jax.random.PRNGKey(0)
    kx, kp = jax.random.split(key)
    params = make_params(kp)

    # 1) Small batch -> fused single-call path.
    B1 = 8
    x_small = jax.random.normal(kx, (B1, 64), jnp.float32)
    out_small = jax.block_until_ready(decoder_forward(x_small, *params))
    ref_small = reference_forward(x_small, *params)
    assert out_small.shape == (B1, 1), out_small.shape
    assert jnp.allclose(out_small, ref_small, atol=1e-4, rtol=1e-4), "fused path mismatch"

    # 2) Ragged multi-tile batch -> two-pass path (small tiles to keep the test small).
    B2 = 300
    x_big = jax.random.normal(jax.random.fold_in(kx, 1), (B2, 64), jnp.float32)
    two_pass = jax.jit(functools.partial(_decoder_forward, fused_max=0, tb_max=128))
    out_big = jax.block_until_ready(two_pass(x_big, *params))
    ref_big = reference_forward(x_big, *params)
    assert out_big.shape == (B2, 1), out_big.shape
    assert jnp.allclose(out_big, ref_big, atol=1e-4, rtol=1e-4), "two-pass path mismatch"

    print("KERNEL_OK")
</pallas_src>

<mosaic_0001>
module attributes {stable_mosaic.version = 11 : i64} {
  func.func @_fused_decoder_kernel(%arg0: i32, %arg1: memref<8x64xf32, #tpu.memory_space<vmem>>, %arg2: memref<64x16xf32, #tpu.memory_space<vmem>>, %arg3: memref<1x16xf32, #tpu.memory_space<vmem>>, %arg4: memref<1x16xf32, #tpu.memory_space<vmem>>, %arg5: memref<1x16xf32, #tpu.memory_space<vmem>>, %arg6: memref<1x1xf32, #tpu.memory_space<vmem>>, %arg7: memref<8x1xf32, #tpu.memory_space<vmem>>) attributes {dimension_semantics = [#tpu.dimension_semantics<arbitrary>], iteration_bounds = array<i64: 1>, scalar_prefetch = 0 : i64, scratch_operands = 0 : i64, tpu.core_type = #tpu.core_type<tc>, window_params = [{pipeline_mode = #tpu.pipeline_mode<synchronous>, transform_indices = @transform_0, window_bounds = array<i64: 8, 64>}, {pipeline_mode = #tpu.pipeline_mode<synchronous>, transform_indices = @transform_1, window_bounds = array<i64: 64, 16>}, {pipeline_mode = #tpu.pipeline_mode<synchronous>, transform_indices = @transform_2, window_bounds = array<i64: 1, 16>}, {pipeline_mode = #tpu.pipeline_mode<synchronous>, transform_indices = @transform_3, window_bounds = array<i64: 1, 16>}, {pipeline_mode = #tpu.pipeline_mode<synchronous>, transform_indices = @transform_4, window_bounds = array<i64: 1, 16>}, {pipeline_mode = #tpu.pipeline_mode<synchronous>, transform_indices = @transform_5, window_bounds = array<i64: 1, 1>}, {pipeline_mode = #tpu.pipeline_mode<synchronous>, transform_indices = @transform_6, window_bounds = array<i64: 8, 1>}]} {
    %c0 = arith.constant 0 : index
    %c0_0 = arith.constant 0 : index
    %0 = vector.load %arg1[%c0, %c0_0] : memref<8x64xf32, #tpu.memory_space<vmem>>, vector<8x64xf32>
    %c0_1 = arith.constant 0 : index
    %c0_2 = arith.constant 0 : index
    %1 = vector.load %arg2[%c0_1, %c0_2] : memref<64x16xf32, #tpu.memory_space<vmem>>, vector<64x16xf32>
    %cst = arith.constant dense<0.000000e+00> : vector<8x16xf32>
    %2 = tpu.matmul %0, %1, %cst {dimension_numbers = #tpu.dot_dimension_numbers<[1], [0], [0], [1], [0, 0, 1, 1], [], []>} : vector<8x64xf32>, vector<64x16xf32>, vector<8x16xf32> -> vector<8x16xf32>
    %cst_3 = arith.constant dense<0.000000e+00> : vector<16xf32>
    %3 = vector.multi_reduction <add>, %2, %cst_3 [0] : vector<8x16xf32> to vector<16xf32>
    %4 = vector.shape_cast %3 : vector<16xf32> to vector<1x16xf32>
    %cst_4 = arith.constant 1.250000e-01 : f32
    %5 = vector.broadcast %cst_4 : f32 to vector<1x16xf32>
    %6 = arith.mulf %4, %5 : vector<1x16xf32>
    %7 = arith.mulf %2, %2 : vector<8x16xf32>
    %cst_5 = arith.constant dense<0.000000e+00> : vector<16xf32>
    %8 = vector.multi_reduction <add>, %7, %cst_5 [0] : vector<8x16xf32> to vector<16xf32>
    %9 = vector.shape_cast %8 : vector<16xf32> to vector<1x16xf32>
    %cst_6 = arith.constant 1.250000e-01 : f32
    %10 = vector.broadcast %cst_6 : f32 to vector<1x16xf32>
    %11 = arith.mulf %9, %10 : vector<1x16xf32>
    %12 = arith.mulf %6, %6 : vector<1x16xf32>
    %13 = arith.subf %11, %12 : vector<1x16xf32>
    %cst_7 = arith.constant 0.000000e+00 : f32
    %14 = vector.broadcast %cst_7 : f32 to vector<1x16xf32>
    %15 = arith.maximumf %13, %14 : vector<1x16xf32>
    %c0_8 = arith.constant 0 : index
    %c0_9 = arith.constant 0 : index
    %16 = vector.load %arg3[%c0_8, %c0_9] : memref<1x16xf32, #tpu.memory_space<vmem>>, vector<1x16xf32>
    %cst_10 = arith.constant 9.99999974E-6 : f32
    %17 = vector.broadcast %cst_10 : f32 to vector<1x16xf32>
    %18 = arith.addf %15, %17 : vector<1x16xf32>
    %19 = math.rsqrt %18 : vector<1x16xf32>
    %20 = arith.mulf %16, %19 : vector<1x16xf32>
    %c0_11 = arith.constant 0 : index
    %c0_12 = arith.constant 0 : index
    %21 = vector.load %arg4[%c0_11, %c0_12] : memref<1x16xf32, #tpu.memory_space<vmem>>, vector<1x16xf32>
    %22 = arith.mulf %6, %20 : vector<1x16xf32>
    %23 = arith.subf %21, %22 : vector<1x16xf32>
    %24 = vector.broadcast %20 : vector<1x16xf32> to vector<8x16xf32>
    %25 = arith.mulf %2, %24 : vector<8x16xf32>
    %26 = vector.broadcast %23 : vector<1x16xf32> to vector<8x16xf32>
    %27 = arith.addf %25, %26 : vector<8x16xf32>
    %cst_13 = arith.constant 0.000000e+00 : f32
    %28 = vector.broadcast %cst_13 : f32 to vector<8x16xf32>
    %29 = arith.maximumf %27, %28 : vector<8x16xf32>
    %c0_14 = arith.constant 0 : index
    %c0_15 = arith.constant 0 : index
    %30 = vector.load %arg5[%c0_14, %c0_15] : memref<1x16xf32, #tpu.memory_space<vmem>>, vector<1x16xf32>
    %31 = vector.broadcast %30 : vector<1x16xf32> to vector<8x16xf32>
    %32 = arith.mulf %29, %31 : vector<8x16xf32>
    %cst_16 = arith.constant dense<0.000000e+00> : vector<8xf32>
    %33 = vector.multi_reduction <add>, %32, %cst_16 [1] : vector<8x16xf32> to vector<8xf32>
    %34 = vector.shape_cast %33 : vector<8xf32> to vector<8x1xf32>
    %c0_17 = arith.constant 0 : index
    %c0_18 = arith.constant 0 : index
    %35 = vector.load %arg6[%c0_17, %c0_18] : memref<1x1xf32, #tpu.memory_space<vmem>>, vector<1x1xf32>
    %36 = vector.broadcast %35 : vector<1x1xf32> to vector<8x1xf32>
    %37 = arith.addf %34, %36 : vector<8x1xf32>
    %c0_19 = arith.constant 0 : index
    %c0_20 = arith.constant 0 : index
    %38 = vector.load %arg7[%c0_19, %c0_20] : memref<8x1xf32, #tpu.memory_space<vmem>>, vector<8x1xf32>
    tpu.vector_store %arg7[%c0_19, %c0_20], %37 {strides = array<i32>} : memref<8x1xf32, #tpu.memory_space<vmem>>, vector<8x1xf32>,
    return
  }
  func.func @transform_0(%arg0: i32) -> (i32, i32) {
    %c0_i32 = arith.constant 0 : i32
    %c0_i32_0 = arith.constant 0 : i32
    %c0_i32_1 = arith.constant 0 : i32
    return %c0_i32, %c0_i32_0 : i32, i32
  }
  func.func @transform_1(%arg0: i32) -> (i32, i32) {
    %c0_i32 = arith.constant 0 : i32
    %c0_i32_0 = arith.constant 0 : i32
    %c0_i32_1 = arith.constant 0 : i32
    return %c0_i32, %c0_i32_0 : i32, i32
  }
  func.func @transform_2(%arg0: i32) -> (i32, i32) {
    %c0_i32 = arith.constant 0 : i32
    %c0_i32_0 = arith.constant 0 : i32
    %c0_i32_1 = arith.constant 0 : i32
    return %c0_i32, %c0_i32_0 : i32, i32
  }
  func.func @transform_3(%arg0: i32) -> (i32, i32) {
    %c0_i32 = arith.constant 0 : i32
    %c0_i32_0 = arith.constant 0 : i32
    %c0_i32_1 = arith.constant 0 : i32
    return %c0_i32, %c0_i32_0 : i32, i32
  }
  func.func @transform_4(%arg0: i32) -> (i32, i32) {
    %c0_i32 = arith.constant 0 : i32
    %c0_i32_0 = arith.constant 0 : i32
    %c0_i32_1 = arith.constant 0 : i32
    return %c0_i32, %c0_i32_0 : i32, i32
  }
  func.func @transform_5(%arg0: i32) -> (i32, i32) {
    %c0_i32 = arith.constant 0 : i32
    %c0_i32_0 = arith.constant 0 : i32
    %c0_i32_1 = arith.constant 0 : i32
    return %c0_i32, %c0_i32_0 : i32, i32
  }
  func.func @transform_6(%arg0: i32) -> (i32, i32) {
    %c0_i32 = arith.constant 0 : i32
    %c0_i32_0 = arith.constant 0 : i32
    %c0_i32_1 = arith.constant 0 : i32
    return %c0_i32, %c0_i32_0 : i32, i32
  }
}

</mosaic_0001>

<llo_original>
// kernel: _decoder_forward.1
$region0: #{_decoder_forward.1}
  #allocation0 [shape = 'u32[]', space=smem, size = 0x4, offset = 0x4, fixed_abs, tag = 'smem constant byte address 0x4 - core index']
  #allocation1 [shape = 'u32[72,128]{1,0:T(1,128)}', space=vmem, size = 0x9000, scoped, tag = 'internal scratch']
  #allocation2 [shape = 'f32[1,1]{1,0:T(1,128)S(1)}', space=vmem, size = 0x200, scoped, tag = 'scoped memory for _decoder_forward.1']
  %s0 = inlined_call_operand.vmem [shape: f32[8,64], index: 0, kind: input, shape index: {}]
  %s1 = inlined_call_operand.vmem [shape: f32[64,16], index: 1, kind: input, shape index: {}]
  %s2 = inlined_call_operand.vmem [shape: f32[1,16], index: 2, kind: input, shape index: {}]
  %s3 = inlined_call_operand.vmem [shape: f32[1,16], index: 3, kind: input, shape index: {}]
  %s4 = inlined_call_operand.vmem [shape: f32[1,16], index: 4, kind: input, shape index: {}]
  %s5 = inlined_call_operand.<no memory space> [shape: f32[1,1], index: 5, kind: input, shape index: {}]
  %s6 = inlined_call_operand.vmem [shape: f32[8,1], index: 6, kind: output, shape index: {}]
  %s7 = sld [smem:[#allocation0]]
  $region34: #{_decoder_forward.1} parent=0
    _
  %s9 = ssub.s32 1, %s7
  %s10 = scalar_select 0, %s9, %s7
  %v11 = vstv %s5
  %12 = vst [vmem:[#allocation2] sm:$0x1] %v11
  // Predicated region
  $region2: #{_decoder_forward.1} parent=0 // pred_check
    _
  $region3: #{_decoder_forward.1} parent=0 // pred_check_branch
    %14 = sbr.rel (0) target = $region5
  $region4: #{_decoder_forward.1} parent=0 // pred_region
    _
  $region5: #{_decoder_forward.1} parent=0 // pred_fallthru
    _
  // Predicated region
  $region6: #{_decoder_forward.1} parent=0 // pred_check
    _
  $region7: #{_decoder_forward.1} parent=0 // pred_check_branch
    %16 = sbr.rel (0) target = $region9
  $region8: #{_decoder_forward.1} parent=0 // pred_region
    _
  $region9: #{_decoder_forward.1} parent=0 // pred_fallthru
    _
  // Predicated region
  $region10: #{_decoder_forward.1} parent=0 // pred_check
    _
  $region11: #{_decoder_forward.1} parent=0 // pred_check_branch
    %18 = sbr.rel (0) target = $region13
  $region12: #{_decoder_forward.1} parent=0 // pred_region
    _
  $region13: #{_decoder_forward.1} parent=0 // pred_fallthru
    _
  // Predicated region
  $region14: #{_decoder_forward.1} parent=0 // pred_check
    _
  $region15: #{_decoder_forward.1} parent=0 // pred_check_branch
    %20 = sbr.rel (0) target = $region17
  $region16: #{_decoder_forward.1} parent=0 // pred_region
    _
  $region17: #{_decoder_forward.1} parent=0 // pred_fallthru
    _
  // Predicated region
  $region18: #{_decoder_forward.1} parent=0 // pred_check
    _
  $region19: #{_decoder_forward.1} parent=0 // pred_check_branch
    %22 = sbr.rel (0) target = $region21
  $region20: #{_decoder_forward.1} parent=0 // pred_region
    _
  $region21: #{_decoder_forward.1} parent=0 // pred_fallthru
    _
  // Predicated region
  $region22: #{_decoder_forward.1} parent=0 // pred_check
    _
  $region23: #{_decoder_forward.1} parent=0 // pred_check_branch
    %24 = sbr.rel (0) target = $region25
  $region24: #{_decoder_forward.1} parent=0 // pred_region
    _
  $region25: #{_decoder_forward.1} parent=0 // pred_fallthru
    _
  %v25 = vld [vmem:[%s0] sm:$0xff]
  %v26 = vld [vmem:[%s1] sm:$0xff]
  %v27 = vld [vmem:[%s1 + $0x8] sm:$0xff]
  %v28 = vld [vmem:[%s1 + $0x10] sm:$0xff]
  %v29 = vld [vmem:[%s1 + $0x18] sm:$0xff]
  %v30 = vld [vmem:[%s1 + $0x20] sm:$0xff]
  %v31 = vld [vmem:[%s1 + $0x28] sm:$0xff]
  %v32 = vld [vmem:[%s1 + $0x30] sm:$0xff]
  %v33 = vld [vmem:[%s1 + $0x38] sm:$0xff]
  %vm34 = vcmask 523264
  %v36 = vsel %vm34, %v25, 0
  %38 = vmatpush.msra.mxu0 0.0
  %39 = vmatpush.msra.mxu0 0.0
  %40 = vmatpush.msra.mxu0 0.0
  %41 = vmatpush.msra.mxu0 0.0
  %42 = vmatpush.msra.mxu0 0.0
  %43 = vmatpush.msra.mxu0 0.0
  %44 = vmatpush.msra.mxu0 0.0
  %45 = vmatpush.msra.mxu0 0.0
  %46 = vmatpush.msra.mxu0 %v33
  %47 = vmatpush.msra.mxu0 %v32
  %48 = vmatpush.msra.mxu0 %v31
  %49 = vmatpush.msra.mxu0 %v30
  %50 = vmatpush.msra.mxu0 %v29
  %51 = vmatpush.msra.mxu0 %v28
  %52 = vmatpush.msra.mxu0 %v27
  %53 = vmatpush.msra.mxu0 %v26
  %54 = vmatmul.f32.gmra.mxu0 %v36
  %v55 = vpop.f32.mrf.mxu0
  %v56 = vadd.f32 0.0, %v55
  %57 = vdwg.mxu0
  %vm58 = vcmask 130048
  %v59 = vsel %vm58, %v56, 0.0
  %v60 = vrot.slane %v59, 4
  %v61 = vadd.f32 %v59, %v60
  %v62 = vrot.slane %v61, 2
  %v63 = vadd.f32 %v61, %v62
  %v64 = vrot.slane %v63, 1
  %v65 = vadd.f32 %v63, %v64
  %v66 = vmul.f32 %v65, 0.125
  %v67 = vmul.f32 %v56, %v56
  %v68 = vsel %vm58, %v67, 0.0
  %v69 = vrot.slane %v68, 4
  %v70 = vadd.f32 %v68, %v69
  %v71 = vrot.slane %v70, 2
  %v72 = vadd.f32 %v70, %v71
  %v73 = vrot.slane %v72, 1
  %v74 = vadd.f32 %v72, %v73
  %v75 = vmul.f32 %v74, 0.125
  %v76 = vmul.f32 %v66, %v66
  %v77 = vsub.f32 %v75, %v76
  %v78 = vmax.f32 %v77, 0.0
  %v79 = vld [vmem:[%s2] sm:$0x1]
  %v80 = vadd.f32 %v78, 1e-05
  %v81 = vrsqrt.pop %v80
  %v82 = vmul.f32 %v81, %v80
  %v83 = vmul.f32 %v82, %v81
  %v84 = vmul.f32 0.5, %v83
  %v85 = vsub.f32 1.5, %v84
  %v86 = vmul.f32 %v81, %v85
  %vm87 = vweird.f32 %v80
  %vm88 = vweird.f32 %v81
  %vm89 = vmor %vm87, %vm88
  %v90 = vsel %vm89, %v81, %v86
  %v91 = vmul.f32 %v79, %v90
  %v92 = vld [vmem:[%s3] sm:$0x1]
  %v93 = vmul.f32 %v66, %v91
  %v94 = vsub.f32 %v92, %v93
  %v96 = vperm.slane %v91, 0
  %v98 = vmul.f32 %v56, %v96
  %v100 = vperm.slane %v94, 0
  %v102 = vadd.f32 %v98, %v100
  %v103 = vmax.f32 %v102, 0.0
  %v104 = vld [vmem:[%s4] sm:$0x1]
  %v106 = vperm.slane %v104, 0
  %v108 = vmul.f32 %v103, %v106
  %v109 = vsel %vm58, %v108, 0.0
  %110 = vadd.xlane.f32.xlu0 %v109
  %v111 = vpop.xlane.xlu0 %110
  %v112 = vld [vmem:[#allocation2] sm:$0x1]
  %v114 = vperm.slane %v112, 0
  %v116 = vadd.f32 %v111, %v114
  %vm117 = vcmask 7168
  %118 = vst.msk [vmem:[%s6] sm:$0xff] %vm117, %v116
  // Predicated region
  $region26: #{_decoder_forward.1} parent=0 // pred_check
    _
  $region27: #{_decoder_forward.1} parent=0 // pred_check_branch
    %120 = sbr.rel (0) target = $region29
  $region28: #{_decoder_forward.1} parent=0 // pred_region
    _
  $region29: #{_decoder_forward.1} parent=0 // pred_fallthru
    _
  // Predicated region
  $region30: #{_decoder_forward.1} parent=0 // pred_check
    _
  $region31: #{_decoder_forward.1} parent=0 // pred_check_branch
    %122 = sbr.rel (0) target = $region33
  $region32: #{_decoder_forward.1} parent=0 // pred_region
    _
  $region33: #{_decoder_forward.1} parent=0 // pred_fallthru
    _

</llo_original>
